<compile_context>
chip_gen: v5e
topology: v5e:2x2
jax: 0.10.0
libtpu: 0.0.40
codegen_flags: <defaults>
</compile_context>

<pallas_src>
import functools

import jax
import jax.numpy as jnp
import numpy as np
from jax.experimental import pallas as pl
from jax.experimental.pallas import tpu as pltpu

HIDDEN_SIZE = 2
INPUT_SIZE = 1
NUM_CLASSES = 1
NUM_LAYERS = 1  # kernel implements the single-layer case (num_layers=1)


def _lstm_kernel(T, B, H, x_ref, p_ref, out_ref):
    """x_ref: (B, T) f32 (input_size == 1); p_ref: (8, 4H) packed params.

    Packed-parameter layout (rows):
      0        : W_ih row (I == 1), gate order (i, f, o, g)   -> (4H,)
      1        : b_ih + b_hh, same gate order                 -> (4H,)
      2 .. 2+H : W_hh^T, same gate order                      -> (H, 4H)
      2+H      : fc weight row (C == 1), cols 0..H            -> (H,)
      3+H      : fc bias, col 0                               -> scalar
    """
    wih = p_ref[0:1, :]              # (1, 4H)
    bias = p_ref[1:2, :]             # (1, 4H)
    whh = p_ref[2:2 + H, :]          # (H, 4H)
    fcw = p_ref[2 + H:3 + H, 0:H]    # (1, H)
    fcb = p_ref[3 + H:4 + H, 0:1]    # (1, 1)

    x = x_ref[...]                   # (B, T)

    h = jnp.zeros((B, H), jnp.float32)
    c = jnp.zeros((B, H), jnp.float32)

    # Fully unrolled recurrence: T is a small static Python int.
    for t in range(T):
        # Input projection (I == 1): outer product on the VPU, no MXU.
        gates = x[:, t:t + 1] * wih + bias                  # (B, 4H)
        # Recurrent projection h @ W_hh^T as H broadcast FMAs on the VPU.
        for k in range(H):
            gates = gates + h[:, k:k + 1] * whh[k:k + 1, :]

        sig = jax.nn.sigmoid(gates[:, :3 * H])               # i, f, o at once
        i = sig[:, 0 * H:1 * H]
        f = sig[:, 1 * H:2 * H]
        o = sig[:, 2 * H:3 * H]
        g = jnp.tanh(gates[:, 3 * H:])

        c = f * c + i * g
        h = o * jnp.tanh(c)

    # Final Linear head (C == 1): multiply + lane reduce, no MXU.
    out_ref[...] = jnp.sum(h * fcw, axis=-1, keepdims=True) + fcb


def prepare_params(params):
    """One-time repack of all LSTM/Linear parameters into a single (8, 4H)
    f32 block (done outside the per-call forward)."""
    H = HIDDEN_SIZE

    def reorder(w):
        # PyTorch LSTM packs gate rows as (i, f, g, o); re-pack to (i, f, o, g)
        # so one sigmoid covers the first 3H gate columns and one tanh the last H.
        return jnp.concatenate([w[:2 * H], w[3 * H:], w[2 * H:3 * H]], axis=0)

    w_ih = reorder(params["w_ih"])                       # (4H, I), I == 1
    w_hh = reorder(params["w_hh"])                       # (4H, H)
    bias = reorder(params["b_ih"] + params["b_hh"])      # (4H,)

    packed = jnp.zeros((8, 4 * H), jnp.float32)
    packed = packed.at[0, :].set(w_ih[:, 0])             # W_ih row
    packed = packed.at[1, :].set(bias)                   # combined bias
    packed = packed.at[2:2 + H, :].set(w_hh.T)           # W_hh^T
    packed = packed.at[2 + H, :H].set(params["fc_w"][0]) # fc weight row
    packed = packed.at[3 + H, 0].set(params["fc_b"][0])  # fc bias
    return packed


def lstm_forward(x, packed_params):
    """x: (B, T, input_size) float32 (batch_first, like the PyTorch module)."""
    B, T, I = x.shape
    assert I == INPUT_SIZE == 1 and NUM_CLASSES == 1
    H, C = HIDDEN_SIZE, NUM_CLASSES

    # I == 1: drop the trailing singleton so time runs along the lane axis.
    # Pure reshape, no transpose -> no per-call layout op.
    x2d = x.reshape(B, T)

    kernel = functools.partial(_lstm_kernel, T, B, H)
    out = pl.pallas_call(
        kernel,
        out_shape=jax.ShapeDtypeStruct((B, C), jnp.float32),
        in_specs=[
            pl.BlockSpec(memory_space=pltpu.MemorySpace.VMEM),
            pl.BlockSpec(memory_space=pltpu.MemorySpace.VMEM),
        ],
        out_specs=pl.BlockSpec(memory_space=pltpu.MemorySpace.VMEM),
    )(x2d, packed_params)
    return out


def init_params(key):
    """Deterministic init mirroring nn.LSTM / nn.Linear default U(-k, k)."""
    H, I, C = HIDDEN_SIZE, INPUT_SIZE, NUM_CLASSES
    k_lstm = 1.0 / np.sqrt(H)
    k_fc = 1.0 / np.sqrt(H)
    ks = jax.random.split(key, 6)
    return {
        "w_ih": jax.random.uniform(ks[0], (4 * H, I), jnp.float32, -k_lstm, k_lstm),
        "w_hh": jax.random.uniform(ks[1], (4 * H, H), jnp.float32, -k_lstm, k_lstm),
        "b_ih": jax.random.uniform(ks[2], (4 * H,), jnp.float32, -k_lstm, k_lstm),
        "b_hh": jax.random.uniform(ks[3], (4 * H,), jnp.float32, -k_lstm, k_lstm),
        "fc_w": jax.random.uniform(ks[4], (C, H), jnp.float32, -k_fc, k_fc),
        "fc_b": jax.random.uniform(ks[5], (C,), jnp.float32, -k_fc, k_fc),
    }


def lstm_reference(x, params):
    """Pure-JAX reference reproducing torch.nn.LSTM (gate order i,f,g,o)."""
    B, T, _ = x.shape
    H = HIDDEN_SIZE
    h = jnp.zeros((B, H), jnp.float32)
    c = jnp.zeros((B, H), jnp.float32)
    w_ih, w_hh = params["w_ih"], params["w_hh"]
    b = params["b_ih"] + params["b_hh"]
    for t in range(T):
        gates = x[:, t, :] @ w_ih.T + h @ w_hh.T + b
        i = jax.nn.sigmoid(gates[:, 0 * H:1 * H])
        f = jax.nn.sigmoid(gates[:, 1 * H:2 * H])
        g = jnp.tanh(gates[:, 2 * H:3 * H])
        o = jax.nn.sigmoid(gates[:, 3 * H:4 * H])
        c = f * c + i * g
        h = o * jnp.tanh(c)
    return h @ params["fc_w"].T + params["fc_b"]


if __name__ == "__main__":
    key = jax.random.PRNGKey(0)
    pkey, xkey = jax.random.split(key)
    params = init_params(pkey)
    packed = prepare_params(params)          # one-time layout prep

    batch, seq_length = 4, 8
    x = jax.random.normal(xkey, (batch, seq_length, INPUT_SIZE), jnp.float32)

    fwd = jax.jit(lstm_forward)
    out = fwd(x, packed)
    out = jax.block_until_ready(out)

    ref = lstm_reference(x, params)
    np.testing.assert_allclose(np.asarray(out), np.asarray(ref),
                               rtol=1e-5, atol=1e-5)
    print("KERNEL_OK")
</pallas_src>

<mosaic_0001>
module attributes {stable_mosaic.version = 11 : i64} {
  func.func @_lstm_kernel(%arg0: memref<4x8xf32, #tpu.memory_space<vmem>>, %arg1: memref<8x8xf32, #tpu.memory_space<vmem>>, %arg2: memref<4x1xf32, #tpu.memory_space<vmem>>) attributes {dimension_semantics = [], scalar_prefetch = 0 : i64, scratch_operands = 0 : i64, tpu.core_type = #tpu.core_type<tc>} {
    %c0 = arith.constant 0 : index
    %c0_0 = arith.constant 0 : index
    %0 = vector.load %arg1[%c0, %c0_0] : memref<8x8xf32, #tpu.memory_space<vmem>>, vector<1x8xf32>
    %c1 = arith.constant 1 : index
    %c0_1 = arith.constant 0 : index
    %1 = vector.load %arg1[%c1, %c0_1] : memref<8x8xf32, #tpu.memory_space<vmem>>, vector<1x8xf32>
    %c2 = arith.constant 2 : index
    %c0_2 = arith.constant 0 : index
    %2 = vector.load %arg1[%c2, %c0_2] : memref<8x8xf32, #tpu.memory_space<vmem>>, vector<2x8xf32>
    %c4 = arith.constant 4 : index
    %c0_3 = arith.constant 0 : index
    %3 = vector.load %arg1[%c4, %c0_3] : memref<8x8xf32, #tpu.memory_space<vmem>>, vector<1x2xf32>
    %c5 = arith.constant 5 : index
    %c0_4 = arith.constant 0 : index
    %4 = vector.load %arg1[%c5, %c0_4] : memref<8x8xf32, #tpu.memory_space<vmem>>, vector<1x1xf32>
    %c0_5 = arith.constant 0 : index
    %c0_6 = arith.constant 0 : index
    %5 = vector.load %arg0[%c0_5, %c0_6] : memref<4x8xf32, #tpu.memory_space<vmem>>, vector<4x8xf32>
    %cst = arith.constant 0.000000e+00 : f32
    %6 = vector.broadcast %cst : f32 to vector<4x2xf32>
    %cst_7 = arith.constant 0.000000e+00 : f32
    %7 = vector.broadcast %cst_7 : f32 to vector<4x2xf32>
    %8 = vector.extract_strided_slice %5 {offsets = [0, 0], sizes = [4, 1], strides = [1, 1]} : vector<4x8xf32> to vector<4x1xf32>
    %9 = vector.broadcast %8 : vector<4x1xf32> to vector<4x8xf32>
    %10 = vector.broadcast %0 : vector<1x8xf32> to vector<4x8xf32>
    %11 = arith.mulf %9, %10 : vector<4x8xf32>
    %12 = vector.broadcast %1 : vector<1x8xf32> to vector<4x8xf32>
    %13 = arith.addf %11, %12 : vector<4x8xf32>
    %14 = vector.extract_strided_slice %6 {offsets = [0, 0], sizes = [4, 1], strides = [1, 1]} : vector<4x2xf32> to vector<4x1xf32>
    %15 = vector.extract_strided_slice %2 {offsets = [0, 0], sizes = [1, 8], strides = [1, 1]} : vector<2x8xf32> to vector<1x8xf32>
    %16 = vector.broadcast %14 : vector<4x1xf32> to vector<4x8xf32>
    %17 = vector.broadcast %15 : vector<1x8xf32> to vector<4x8xf32>
    %18 = arith.mulf %16, %17 : vector<4x8xf32>
    %19 = arith.addf %13, %18 : vector<4x8xf32>
    %20 = vector.extract_strided_slice %6 {offsets = [0, 1], sizes = [4, 1], strides = [1, 1]} : vector<4x2xf32> to vector<4x1xf32>
    %21 = vector.extract_strided_slice %2 {offsets = [1, 0], sizes = [1, 8], strides = [1, 1]} : vector<2x8xf32> to vector<1x8xf32>
    %22 = vector.broadcast %20 : vector<4x1xf32> to vector<4x8xf32>
    %23 = vector.broadcast %21 : vector<1x8xf32> to vector<4x8xf32>
    %24 = arith.mulf %22, %23 : vector<4x8xf32>
    %25 = arith.addf %19, %24 : vector<4x8xf32>
    %26 = vector.extract_strided_slice %25 {offsets = [0, 0], sizes = [4, 6], strides = [1, 1]} : vector<4x8xf32> to vector<4x6xf32>
    %27 = arith.negf %26 : vector<4x6xf32>
    %28 = math.exp %27 : vector<4x6xf32>
    %cst_8 = arith.constant 1.000000e+00 : f32
    %29 = vector.broadcast %cst_8 : f32 to vector<4x6xf32>
    %30 = arith.addf %29, %28 : vector<4x6xf32>
    %31 = arith.divf %29, %30 : vector<4x6xf32>
    %32 = vector.extract_strided_slice %31 {offsets = [0, 0], sizes = [4, 2], strides = [1, 1]} : vector<4x6xf32> to vector<4x2xf32>
    %33 = vector.extract_strided_slice %31 {offsets = [0, 2], sizes = [4, 2], strides = [1, 1]} : vector<4x6xf32> to vector<4x2xf32>
    %34 = vector.extract_strided_slice %31 {offsets = [0, 4], sizes = [4, 2], strides = [1, 1]} : vector<4x6xf32> to vector<4x2xf32>
    %35 = vector.extract_strided_slice %25 {offsets = [0, 6], sizes = [4, 2], strides = [1, 1]} : vector<4x8xf32> to vector<4x2xf32>
    %36 = math.tanh %35 : vector<4x2xf32>
    %37 = arith.mulf %33, %7 : vector<4x2xf32>
    %38 = arith.mulf %32, %36 : vector<4x2xf32>
    %39 = arith.addf %37, %38 : vector<4x2xf32>
    %40 = math.tanh %39 : vector<4x2xf32>
    %41 = arith.mulf %34, %40 : vector<4x2xf32>
    %42 = vector.extract_strided_slice %5 {offsets = [0, 1], sizes = [4, 1], strides = [1, 1]} : vector<4x8xf32> to vector<4x1xf32>
    %43 = vector.broadcast %42 : vector<4x1xf32> to vector<4x8xf32>
    %44 = vector.broadcast %0 : vector<1x8xf32> to vector<4x8xf32>
    %45 = arith.mulf %43, %44 : vector<4x8xf32>
    %46 = vector.broadcast %1 : vector<1x8xf32> to vector<4x8xf32>
    %47 = arith.addf %45, %46 : vector<4x8xf32>
    %48 = vector.extract_strided_slice %41 {offsets = [0, 0], sizes = [4, 1], strides = [1, 1]} : vector<4x2xf32> to vector<4x1xf32>
    %49 = vector.extract_strided_slice %2 {offsets = [0, 0], sizes = [1, 8], strides = [1, 1]} : vector<2x8xf32> to vector<1x8xf32>
    %50 = vector.broadcast %48 : vector<4x1xf32> to vector<4x8xf32>
    %51 = vector.broadcast %49 : vector<1x8xf32> to vector<4x8xf32>
    %52 = arith.mulf %50, %51 : vector<4x8xf32>
    %53 = arith.addf %47, %52 : vector<4x8xf32>
    %54 = vector.extract_strided_slice %41 {offsets = [0, 1], sizes = [4, 1], strides = [1, 1]} : vector<4x2xf32> to vector<4x1xf32>
    %55 = vector.extract_strided_slice %2 {offsets = [1, 0], sizes = [1, 8], strides = [1, 1]} : vector<2x8xf32> to vector<1x8xf32>
    %56 = vector.broadcast %54 : vector<4x1xf32> to vector<4x8xf32>
    %57 = vector.broadcast %55 : vector<1x8xf32> to vector<4x8xf32>
    %58 = arith.mulf %56, %57 : vector<4x8xf32>
    %59 = arith.addf %53, %58 : vector<4x8xf32>
    %60 = vector.extract_strided_slice %59 {offsets = [0, 0], sizes = [4, 6], strides = [1, 1]} : vector<4x8xf32> to vector<4x6xf32>
    %61 = arith.negf %60 : vector<4x6xf32>
    %62 = math.exp %61 : vector<4x6xf32>
    %cst_9 = arith.constant 1.000000e+00 : f32
    %63 = vector.broadcast %cst_9 : f32 to vector<4x6xf32>
    %64 = arith.addf %63, %62 : vector<4x6xf32>
    %65 = arith.divf %63, %64 : vector<4x6xf32>
    %66 = vector.extract_strided_slice %65 {offsets = [0, 0], sizes = [4, 2], strides = [1, 1]} : vector<4x6xf32> to vector<4x2xf32>
    %67 = vector.extract_strided_slice %65 {offsets = [0, 2], sizes = [4, 2], strides = [1, 1]} : vector<4x6xf32> to vector<4x2xf32>
    %68 = vector.extract_strided_slice %65 {offsets = [0, 4], sizes = [4, 2], strides = [1, 1]} : vector<4x6xf32> to vector<4x2xf32>
    %69 = vector.extract_strided_slice %59 {offsets = [0, 6], sizes = [4, 2], strides = [1, 1]} : vector<4x8xf32> to vector<4x2xf32>
    %70 = math.tanh %69 : vector<4x2xf32>
    %71 = arith.mulf %67, %39 : vector<4x2xf32>
    %72 = arith.mulf %66, %70 : vector<4x2xf32>
    %73 = arith.addf %71, %72 : vector<4x2xf32>
    %74 = math.tanh %73 : vector<4x2xf32>
    %75 = arith.mulf %68, %74 : vector<4x2xf32>
    %76 = vector.extract_strided_slice %5 {offsets = [0, 2], sizes = [4, 1], strides = [1, 1]} : vector<4x8xf32> to vector<4x1xf32>
    %77 = vector.broadcast %76 : vector<4x1xf32> to vector<4x8xf32>
    %78 = vector.broadcast %0 : vector<1x8xf32> to vector<4x8xf32>
    %79 = arith.mulf %77, %78 : vector<4x8xf32>
    %80 = vector.broadcast %1 : vector<1x8xf32> to vector<4x8xf32>
    %81 = arith.addf %79, %80 : vector<4x8xf32>
    %82 = vector.extract_strided_slice %75 {offsets = [0, 0], sizes = [4, 1], strides = [1, 1]} : vector<4x2xf32> to vector<4x1xf32>
    %83 = vector.extract_strided_slice %2 {offsets = [0, 0], sizes = [1, 8], strides = [1, 1]} : vector<2x8xf32> to vector<1x8xf32>
    %84 = vector.broadcast %82 : vector<4x1xf32> to vector<4x8xf32>
    %85 = vector.broadcast %83 : vector<1x8xf32> to vector<4x8xf32>
    %86 = arith.mulf %84, %85 : vector<4x8xf32>
    %87 = arith.addf %81, %86 : vector<4x8xf32>
    %88 = vector.extract_strided_slice %75 {offsets = [0, 1], sizes = [4, 1], strides = [1, 1]} : vector<4x2xf32> to vector<4x1xf32>
    %89 = vector.extract_strided_slice %2 {offsets = [1, 0], sizes = [1, 8], strides = [1, 1]} : vector<2x8xf32> to vector<1x8xf32>
    %90 = vector.broadcast %88 : vector<4x1xf32> to vector<4x8xf32>
    %91 = vector.broadcast %89 : vector<1x8xf32> to vector<4x8xf32>
    %92 = arith.mulf %90, %91 : vector<4x8xf32>
    %93 = arith.addf %87, %92 : vector<4x8xf32>
    %94 = vector.extract_strided_slice %93 {offsets = [0, 0], sizes = [4, 6], strides = [1, 1]} : vector<4x8xf32> to vector<4x6xf32>
    %95 = arith.negf %94 : vector<4x6xf32>
    %96 = math.exp %95 : vector<4x6xf32>
    %cst_10 = arith.constant 1.000000e+00 : f32
    %97 = vector.broadcast %cst_10 : f32 to vector<4x6xf32>
    %98 = arith.addf %97, %96 : vector<4x6xf32>
    %99 = arith.divf %97, %98 : vector<4x6xf32>
    %100 = vector.extract_strided_slice %99 {offsets = [0, 0], sizes = [4, 2], strides = [1, 1]} : vector<4x6xf32> to vector<4x2xf32>
    %101 = vector.extract_strided_slice %99 {offsets = [0, 2], sizes = [4, 2], strides = [1, 1]} : vector<4x6xf32> to vector<4x2xf32>
    %102 = vector.extract_strided_slice %99 {offsets = [0, 4], sizes = [4, 2], strides = [1, 1]} : vector<4x6xf32> to vector<4x2xf32>
    %103 = vector.extract_strided_slice %93 {offsets = [0, 6], sizes = [4, 2], strides = [1, 1]} : vector<4x8xf32> to vector<4x2xf32>
    %104 = math.tanh %103 : vector<4x2xf32>
    %105 = arith.mulf %101, %73 : vector<4x2xf32>
    %106 = arith.mulf %100, %104 : vector<4x2xf32>
    %107 = arith.addf %105, %106 : vector<4x2xf32>
    %108 = math.tanh %107 : vector<4x2xf32>
    %109 = arith.mulf %102, %108 : vector<4x2xf32>
    %110 = vector.extract_strided_slice %5 {offsets = [0, 3], sizes = [4, 1], strides = [1, 1]} : vector<4x8xf32> to vector<4x1xf32>
    %111 = vector.broadcast %110 : vector<4x1xf32> to vector<4x8xf32>
    %112 = vector.broadcast %0 : vector<1x8xf32> to vector<4x8xf32>
    %113 = arith.mulf %111, %112 : vector<4x8xf32>
    %114 = vector.broadcast %1 : vector<1x8xf32> to vector<4x8xf32>
    %115 = arith.addf %113, %114 : vector<4x8xf32>
    %116 = vector.extract_strided_slice %109 {offsets = [0, 0], sizes = [4, 1], strides = [1, 1]} : vector<4x2xf32> to vector<4x1xf32>
    %117 = vector.extract_strided_slice %2 {offsets = [0, 0], sizes = [1, 8], strides = [1, 1]} : vector<2x8xf32> to vector<1x8xf32>
    %118 = vector.broadcast %116 : vector<4x1xf32> to vector<4x8xf32>
    %119 = vector.broadcast %117 : vector<1x8xf32> to vector<4x8xf32>
    %120 = arith.mulf %118, %119 : vector<4x8xf32>
    %121 = arith.addf %115, %120 : vector<4x8xf32>
    %122 = vector.extract_strided_slice %109 {offsets = [0, 1], sizes = [4, 1], strides = [1, 1]} : vector<4x2xf32> to vector<4x1xf32>
    %123 = vector.extract_strided_slice %2 {offsets = [1, 0], sizes = [1, 8], strides = [1, 1]} : vector<2x8xf32> to vector<1x8xf32>
    %124 = vector.broadcast %122 : vector<4x1xf32> to vector<4x8xf32>
    %125 = vector.broadcast %123 : vector<1x8xf32> to vector<4x8xf32>
    %126 = arith.mulf %124, %125 : vector<4x8xf32>
    %127 = arith.addf %121, %126 : vector<4x8xf32>
    %128 = vector.extract_strided_slice %127 {offsets = [0, 0], sizes = [4, 6], strides = [1, 1]} : vector<4x8xf32> to vector<4x6xf32>
    %129 = arith.negf %128 : vector<4x6xf32>
    %130 = math.exp %129 : vector<4x6xf32>
    %cst_11 = arith.constant 1.000000e+00 : f32
    %131 = vector.broadcast %cst_11 : f32 to vector<4x6xf32>
    %132 = arith.addf %131, %130 : vector<4x6xf32>
    %133 = arith.divf %131, %132 : vector<4x6xf32>
    %134 = vector.extract_strided_slice %133 {offsets = [0, 0], sizes = [4, 2], strides = [1, 1]} : vector<4x6xf32> to vector<4x2xf32>
    %135 = vector.extract_strided_slice %133 {offsets = [0, 2], sizes = [4, 2], strides = [1, 1]} : vector<4x6xf32> to vector<4x2xf32>
    %136 = vector.extract_strided_slice %133 {offsets = [0, 4], sizes = [4, 2], strides = [1, 1]} : vector<4x6xf32> to vector<4x2xf32>
    %137 = vector.extract_strided_slice %127 {offsets = [0, 6], sizes = [4, 2], strides = [1, 1]} : vector<4x8xf32> to vector<4x2xf32>
    %138 = math.tanh %137 : vector<4x2xf32>
    %139 = arith.mulf %135, %107 : vector<4x2xf32>
    %140 = arith.mulf %134, %138 : vector<4x2xf32>
    %141 = arith.addf %139, %140 : vector<4x2xf32>
    %142 = math.tanh %141 : vector<4x2xf32>
    %143 = arith.mulf %136, %142 : vector<4x2xf32>
    %144 = vector.extract_strided_slice %5 {offsets = [0, 4], sizes = [4, 1], strides = [1, 1]} : vector<4x8xf32> to vector<4x1xf32>
    %145 = vector.broadcast %144 : vector<4x1xf32> to vector<4x8xf32>
    %146 = vector.broadcast %0 : vector<1x8xf32> to vector<4x8xf32>
    %147 = arith.mulf %145, %146 : vector<4x8xf32>
    %148 = vector.broadcast %1 : vector<1x8xf32> to vector<4x8xf32>
    %149 = arith.addf %147, %148 : vector<4x8xf32>
    %150 = vector.extract_strided_slice %143 {offsets = [0, 0], sizes = [4, 1], strides = [1, 1]} : vector<4x2xf32> to vector<4x1xf32>
    %151 = vector.extract_strided_slice %2 {offsets = [0, 0], sizes = [1, 8], strides = [1, 1]} : vector<2x8xf32> to vector<1x8xf32>
    %152 = vector.broadcast %150 : vector<4x1xf32> to vector<4x8xf32>
    %153 = vector.broadcast %151 : vector<1x8xf32> to vector<4x8xf32>
    %154 = arith.mulf %152, %153 : vector<4x8xf32>
    %155 = arith.addf %149, %154 : vector<4x8xf32>
    %156 = vector.extract_strided_slice %143 {offsets = [0, 1], sizes = [4, 1], strides = [1, 1]} : vector<4x2xf32> to vector<4x1xf32>
    %157 = vector.extract_strided_slice %2 {offsets = [1, 0], sizes = [1, 8], strides = [1, 1]} : vector<2x8xf32> to vector<1x8xf32>
    %158 = vector.broadcast %156 : vector<4x1xf32> to vector<4x8xf32>
    %159 = vector.broadcast %157 : vector<1x8xf32> to vector<4x8xf32>
    %160 = arith.mulf %158, %159 : vector<4x8xf32>
    %161 = arith.addf %155, %160 : vector<4x8xf32>
    %162 = vector.extract_strided_slice %161 {offsets = [0, 0], sizes = [4, 6], strides = [1, 1]} : vector<4x8xf32> to vector<4x6xf32>
    %163 = arith.negf %162 : vector<4x6xf32>
    %164 = math.exp %163 : vector<4x6xf32>
    %cst_12 = arith.constant 1.000000e+00 : f32
    %165 = vector.broadcast %cst_12 : f32 to vector<4x6xf32>
    %166 = arith.addf %165, %164 : vector<4x6xf32>
    %167 = arith.divf %165, %166 : vector<4x6xf32>
    %168 = vector.extract_strided_slice %167 {offsets = [0, 0], sizes = [4, 2], strides = [1, 1]} : vector<4x6xf32> to vector<4x2xf32>
    %169 = vector.extract_strided_slice %167 {offsets = [0, 2], sizes = [4, 2], strides = [1, 1]} : vector<4x6xf32> to vector<4x2xf32>
    %170 = vector.extract_strided_slice %167 {offsets = [0, 4], sizes = [4, 2], strides = [1, 1]} : vector<4x6xf32> to vector<4x2xf32>
    %171 = vector.extract_strided_slice %161 {offsets = [0, 6], sizes = [4, 2], strides = [1, 1]} : vector<4x8xf32> to vector<4x2xf32>
    %172 = math.tanh %171 : vector<4x2xf32>
    %173 = arith.mulf %169, %141 : vector<4x2xf32>
    %174 = arith.mulf %168, %172 : vector<4x2xf32>
    %175 = arith.addf %173, %174 : vector<4x2xf32>
    %176 = math.tanh %175 : vector<4x2xf32>
    %177 = arith.mulf %170, %176 : vector<4x2xf32>
    %178 = vector.extract_strided_slice %5 {offsets = [0, 5], sizes = [4, 1], strides = [1, 1]} : vector<4x8xf32> to vector<4x1xf32>
    %179 = vector.broadcast %178 : vector<4x1xf32> to vector<4x8xf32>
    %180 = vector.broadcast %0 : vector<1x8xf32> to vector<4x8xf32>
    %181 = arith.mulf %179, %180 : vector<4x8xf32>
    %182 = vector.broadcast %1 : vector<1x8xf32> to vector<4x8xf32>
    %183 = arith.addf %181, %182 : vector<4x8xf32>
    %184 = vector.extract_strided_slice %177 {offsets = [0, 0], sizes = [4, 1], strides = [1, 1]} : vector<4x2xf32> to vector<4x1xf32>
    %185 = vector.extract_strided_slice %2 {offsets = [0, 0], sizes = [1, 8], strides = [1, 1]} : vector<2x8xf32> to vector<1x8xf32>
    %186 = vector.broadcast %184 : vector<4x1xf32> to vector<4x8xf32>
    %187 = vector.broadcast %185 : vector<1x8xf32> to vector<4x8xf32>
    %188 = arith.mulf %186, %187 : vector<4x8xf32>
    %189 = arith.addf %183, %188 : vector<4x8xf32>
    %190 = vector.extract_strided_slice %177 {offsets = [0, 1], sizes = [4, 1], strides = [1, 1]} : vector<4x2xf32> to vector<4x1xf32>
    %191 = vector.extract_strided_slice %2 {offsets = [1, 0], sizes = [1, 8], strides = [1, 1]} : vector<2x8xf32> to vector<1x8xf32>
    %192 = vector.broadcast %190 : vector<4x1xf32> to vector<4x8xf32>
    %193 = vector.broadcast %191 : vector<1x8xf32> to vector<4x8xf32>
    %194 = arith.mulf %192, %193 : vector<4x8xf32>
    %195 = arith.addf %189, %194 : vector<4x8xf32>
    %196 = vector.extract_strided_slice %195 {offsets = [0, 0], sizes = [4, 6], strides = [1, 1]} : vector<4x8xf32> to vector<4x6xf32>
    %197 = arith.negf %196 : vector<4x6xf32>
    %198 = math.exp %197 : vector<4x6xf32>
    %cst_13 = arith.constant 1.000000e+00 : f32
    %199 = vector.broadcast %cst_13 : f32 to vector<4x6xf32>
    %200 = arith.addf %199, %198 : vector<4x6xf32>
    %201 = arith.divf %199, %200 : vector<4x6xf32>
    %202 = vector.extract_strided_slice %201 {offsets = [0, 0], sizes = [4, 2], strides = [1, 1]} : vector<4x6xf32> to vector<4x2xf32>
    %203 = vector.extract_strided_slice %201 {offsets = [0, 2], sizes = [4, 2], strides = [1, 1]} : vector<4x6xf32> to vector<4x2xf32>
    %204 = vector.extract_strided_slice %201 {offsets = [0, 4], sizes = [4, 2], strides = [1, 1]} : vector<4x6xf32> to vector<4x2xf32>
    %205 = vector.extract_strided_slice %195 {offsets = [0, 6], sizes = [4, 2], strides = [1, 1]} : vector<4x8xf32> to vector<4x2xf32>
    %206 = math.tanh %205 : vector<4x2xf32>
    %207 = arith.mulf %203, %175 : vector<4x2xf32>
    %208 = arith.mulf %202, %206 : vector<4x2xf32>
    %209 = arith.addf %207, %208 : vector<4x2xf32>
    %210 = math.tanh %209 : vector<4x2xf32>
    %211 = arith.mulf %204, %210 : vector<4x2xf32>
    %212 = vector.extract_strided_slice %5 {offsets = [0, 6], sizes = [4, 1], strides = [1, 1]} : vector<4x8xf32> to vector<4x1xf32>
    %213 = vector.broadcast %212 : vector<4x1xf32> to vector<4x8xf32>
    %214 = vector.broadcast %0 : vector<1x8xf32> to vector<4x8xf32>
    %215 = arith.mulf %213, %214 : vector<4x8xf32>
    %216 = vector.broadcast %1 : vector<1x8xf32> to vector<4x8xf32>
    %217 = arith.addf %215, %216 : vector<4x8xf32>
    %218 = vector.extract_strided_slice %211 {offsets = [0, 0], sizes = [4, 1], strides = [1, 1]} : vector<4x2xf32> to vector<4x1xf32>
    %219 = vector.extract_strided_slice %2 {offsets = [0, 0], sizes = [1, 8], strides = [1, 1]} : vector<2x8xf32> to vector<1x8xf32>
    %220 = vector.broadcast %218 : vector<4x1xf32> to vector<4x8xf32>
    %221 = vector.broadcast %219 : vector<1x8xf32> to vector<4x8xf32>
    %222 = arith.mulf %220, %221 : vector<4x8xf32>
    %223 = arith.addf %217, %222 : vector<4x8xf32>
    %224 = vector.extract_strided_slice %211 {offsets = [0, 1], sizes = [4, 1], strides = [1, 1]} : vector<4x2xf32> to vector<4x1xf32>
    %225 = vector.extract_strided_slice %2 {offsets = [1, 0], sizes = [1, 8], strides = [1, 1]} : vector<2x8xf32> to vector<1x8xf32>
    %226 = vector.broadcast %224 : vector<4x1xf32> to vector<4x8xf32>
    %227 = vector.broadcast %225 : vector<1x8xf32> to vector<4x8xf32>
    %228 = arith.mulf %226, %227 : vector<4x8xf32>
    %229 = arith.addf %223, %228 : vector<4x8xf32>
    %230 = vector.extract_strided_slice %229 {offsets = [0, 0], sizes = [4, 6], strides = [1, 1]} : vector<4x8xf32> to vector<4x6xf32>
    %231 = arith.negf %230 : vector<4x6xf32>
    %232 = math.exp %231 : vector<4x6xf32>
    %cst_14 = arith.constant 1.000000e+00 : f32
    %233 = vector.broadcast %cst_14 : f32 to vector<4x6xf32>
    %234 = arith.addf %233, %232 : vector<4x6xf32>
    %235 = arith.divf %233, %234 : vector<4x6xf32>
    %236 = vector.extract_strided_slice %235 {offsets = [0, 0], sizes = [4, 2], strides = [1, 1]} : vector<4x6xf32> to vector<4x2xf32>
    %237 = vector.extract_strided_slice %235 {offsets = [0, 2], sizes = [4, 2], strides = [1, 1]} : vector<4x6xf32> to vector<4x2xf32>
    %238 = vector.extract_strided_slice %235 {offsets = [0, 4], sizes = [4, 2], strides = [1, 1]} : vector<4x6xf32> to vector<4x2xf32>
    %239 = vector.extract_strided_slice %229 {offsets = [0, 6], sizes = [4, 2], strides = [1, 1]} : vector<4x8xf32> to vector<4x2xf32>
    %240 = math.tanh %239 : vector<4x2xf32>
    %241 = arith.mulf %237, %209 : vector<4x2xf32>
    %242 = arith.mulf %236, %240 : vector<4x2xf32>
    %243 = arith.addf %241, %242 : vector<4x2xf32>
    %244 = math.tanh %243 : vector<4x2xf32>
    %245 = arith.mulf %238, %244 : vector<4x2xf32>
    %246 = vector.extract_strided_slice %5 {offsets = [0, 7], sizes = [4, 1], strides = [1, 1]} : vector<4x8xf32> to vector<4x1xf32>
    %247 = vector.broadcast %246 : vector<4x1xf32> to vector<4x8xf32>
    %248 = vector.broadcast %0 : vector<1x8xf32> to vector<4x8xf32>
    %249 = arith.mulf %247, %248 : vector<4x8xf32>
    %250 = vector.broadcast %1 : vector<1x8xf32> to vector<4x8xf32>
    %251 = arith.addf %249, %250 : vector<4x8xf32>
    %252 = vector.extract_strided_slice %245 {offsets = [0, 0], sizes = [4, 1], strides = [1, 1]} : vector<4x2xf32> to vector<4x1xf32>
    %253 = vector.extract_strided_slice %2 {offsets = [0, 0], sizes = [1, 8], strides = [1, 1]} : vector<2x8xf32> to vector<1x8xf32>
    %254 = vector.broadcast %252 : vector<4x1xf32> to vector<4x8xf32>
    %255 = vector.broadcast %253 : vector<1x8xf32> to vector<4x8xf32>
    %256 = arith.mulf %254, %255 : vector<4x8xf32>
    %257 = arith.addf %251, %256 : vector<4x8xf32>
    %258 = vector.extract_strided_slice %245 {offsets = [0, 1], sizes = [4, 1], strides = [1, 1]} : vector<4x2xf32> to vector<4x1xf32>
    %259 = vector.extract_strided_slice %2 {offsets = [1, 0], sizes = [1, 8], strides = [1, 1]} : vector<2x8xf32> to vector<1x8xf32>
    %260 = vector.broadcast %258 : vector<4x1xf32> to vector<4x8xf32>
    %261 = vector.broadcast %259 : vector<1x8xf32> to vector<4x8xf32>
    %262 = arith.mulf %260, %261 : vector<4x8xf32>
    %263 = arith.addf %257, %262 : vector<4x8xf32>
    %264 = vector.extract_strided_slice %263 {offsets = [0, 0], sizes = [4, 6], strides = [1, 1]} : vector<4x8xf32> to vector<4x6xf32>
    %265 = arith.negf %264 : vector<4x6xf32>
    %266 = math.exp %265 : vector<4x6xf32>
    %cst_15 = arith.constant 1.000000e+00 : f32
    %267 = vector.broadcast %cst_15 : f32 to vector<4x6xf32>
    %268 = arith.addf %267, %266 : vector<4x6xf32>
    %269 = arith.divf %267, %268 : vector<4x6xf32>
    %270 = vector.extract_strided_slice %269 {offsets = [0, 0], sizes = [4, 2], strides = [1, 1]} : vector<4x6xf32> to vector<4x2xf32>
    %271 = vector.extract_strided_slice %269 {offsets = [0, 2], sizes = [4, 2], strides = [1, 1]} : vector<4x6xf32> to vector<4x2xf32>
    %272 = vector.extract_strided_slice %269 {offsets = [0, 4], sizes = [4, 2], strides = [1, 1]} : vector<4x6xf32> to vector<4x2xf32>
    %273 = vector.extract_strided_slice %263 {offsets = [0, 6], sizes = [4, 2], strides = [1, 1]} : vector<4x8xf32> to vector<4x2xf32>
    %274 = math.tanh %273 : vector<4x2xf32>
    %275 = arith.mulf %271, %243 : vector<4x2xf32>
    %276 = arith.mulf %270, %274 : vector<4x2xf32>
    %277 = arith.addf %275, %276 : vector<4x2xf32>
    %278 = math.tanh %277 : vector<4x2xf32>
    %279 = arith.mulf %272, %278 : vector<4x2xf32>
    %280 = vector.broadcast %3 : vector<1x2xf32> to vector<4x2xf32>
    %281 = arith.mulf %279, %280 : vector<4x2xf32>
    %cst_16 = arith.constant dense<0.000000e+00> : vector<4xf32>
    %282 = vector.multi_reduction <add>, %281, %cst_16 [1] : vector<4x2xf32> to vector<4xf32>
    %283 = vector.shape_cast %282 : vector<4xf32> to vector<4x1xf32>
    %284 = vector.broadcast %4 : vector<1x1xf32> to vector<4x1xf32>
    %285 = arith.addf %283, %284 : vector<4x1xf32>
    %c0_17 = arith.constant 0 : index
    %c0_18 = arith.constant 0 : index
    %286 = vector.load %arg2[%c0_17, %c0_18] : memref<4x1xf32, #tpu.memory_space<vmem>>, vector<4x1xf32>
    tpu.vector_store %arg2[%c0_17, %c0_18], %285 {strides = array<i32>} : memref<4x1xf32, #tpu.memory_space<vmem>>, vector<4x1xf32>,
    return
  }
}

</mosaic_0001>

<llo_original>
// kernel: lstm_forward.1
$region0: #{lstm_forward.1}
  #allocation0 [shape = 'u32[]', space=smem, size = 0x4, offset = 0x4, fixed_abs, tag = 'smem constant byte address 0x4 - core index']
  #allocation1 [shape = 'u32[72,128]{1,0:T(1,128)}', space=vmem, size = 0x9000, scoped, tag = 'internal scratch']
  %s0 = inlined_call_operand.hbm [shape: f32[4,8], index: 0, kind: input, shape index: {}]
  %s1 = inlined_call_operand.hbm [shape: f32[8,8], index: 1, kind: input, shape index: {}]
  %s2 = inlined_call_operand.vmem [shape: f32[4,1], index: 2, kind: output, shape index: {}]
  %s3 = sld [smem:[#allocation0]]
  $region26: #{lstm_forward.1} parent=0
    _
  %s5 = ssub.s32 1, %s3
  %s6 = scalar_select 0, %s5, %s3
  $region1: #{lstm_forward.1} parent=0
    #allocation2 [shape = 'u8[2048]{0}', space=vmem, size = 0x800, scoped, tag = 'input window, operand 0, single buffered']
    #allocation3 [shape = 's32[1]{0}', space=sflag, size = 0x4, scoped, tag = 'scoped memory for lstm_forward.1']
    #allocation4 [shape = 'u8[4096]{0}', space=vmem, size = 0x1000, scoped, tag = 'input window, operand 1, single buffered']
    #allocation5 [shape = 's32[1]{0}', space=sflag, size = 0x4, scoped, tag = 'scoped memory for lstm_forward.1']
    %7 = vsyncpa [#allocation3], 0
    %8 = vsyncpa [#allocation5], 0
    // Predicated region
    $region2: #{lstm_forward.1} parent=1 // pred_check
      _
    $region3: #{lstm_forward.1} parent=1 // pred_check_branch
      %10 = sbr.rel (0) target = $region5
    $region4: #{lstm_forward.1} parent=1 // pred_region
      %12 = vsyncadd [#allocation3], 0
      %s14 = sshll.u32 %s0, 4
      %s15 = int_to_ptr.hbm [resolvable:$true] %s14
      %s16 = sshll.u32 [#allocation2], 4
      %s17 = int_to_ptr.vmem [resolvable:$true] %s16
      %19 = dma.hbm_to_vmem [thread:$0]  %s15, 64, %s17, [#allocation3]
    $region5: #{lstm_forward.1} parent=1 // pred_fallthru
      _
    // Predicated region
    $region6: #{lstm_forward.1} parent=1 // pred_check
      _
    $region7: #{lstm_forward.1} parent=1 // pred_check_branch
      %21 = sbr.rel (0) target = $region9
    $region8: #{lstm_forward.1} parent=1 // pred_region
      %23 = vsyncadd [#allocation5], 0
      %s25 = sshll.u32 %s1, 4
      %s26 = int_to_ptr.hbm [resolvable:$true] %s25
      %s27 = sshll.u32 [#allocation4], 4
      %s28 = int_to_ptr.vmem [resolvable:$true] %s27
      %30 = dma.hbm_to_vmem [thread:$0]  %s26, 128, %s28, [#allocation5]
    $region9: #{lstm_forward.1} parent=1 // pred_fallthru
      _
    // Predicated region
    $region10: #{lstm_forward.1} parent=1 // pred_check
      _
    $region11: #{lstm_forward.1} parent=1 // pred_check_branch
      %32 = sbr.rel (0) target = $region13
    $region12: #{lstm_forward.1} parent=1 // pred_region
      %34 = dma.done [#allocation3], 64
    $region13: #{lstm_forward.1} parent=1 // pred_fallthru
      _
    // Predicated region
    $region14: #{lstm_forward.1} parent=1 // pred_check
      _
    $region15: #{lstm_forward.1} parent=1 // pred_check_branch
      %36 = sbr.rel (0) target = $region17
    $region16: #{lstm_forward.1} parent=1 // pred_region
      %38 = dma.done [#allocation5], 128
    $region17: #{lstm_forward.1} parent=1 // pred_fallthru
      _
    %v39 = vld [vmem:[#allocation4] sm:$0x1]
    %v40 = vld [vmem:[#allocation4 + $0x1] sm:$0x1]
    %v41 = vld [vmem:[#allocation4 + $0x2] sm:$0x3]
    %v42 = vld [vmem:[#allocation4 + $0x4] sm:$0x1]
    %v43 = vld [vmem:[#allocation4 + $0x5] sm:$0x1]
    %v44 = vld [vmem:[#allocation2] sm:$0xf]
    %46 = vset.pattern.permute.xlu0 0
    %47 = vperm.xlu0 %46, %v44
    %v48 = vpop.permute.xlu0 %47
    %v50 = vperm.slane %v39, 0
    %v51 = vmul.f32 %v48, %v50
    %v52 = vperm.slane %v40, 0
    %v53 = vadd.f32 %v51, %v52
    %v54 = vperm.slane %v41, 0
    %v55 = vmul.f32 %v54, 0.0
    %v56 = vadd.f32 %v53, %v55
    %v57 = vperm.slane %v41, 1
    %v58 = vmul.f32 %v57, 0.0
    %v59 = vadd.f32 %v56, %v58
    %v60 = vxor.u32 %v59, 2147483648
    %v61 = vmul.f32 %v60, 1.442695
    %v62 = vpow.pop %v61
    %v63 = vadd.f32 %v62, 1.0
    %v64 = vrcp.pop %v63
    %v65 = vmul.f32 %v63, %v64
    %v66 = vsub.f32 1.0, %v65
    %v67 = vmul.f32 %v64, %v66
    %v68 = vadd.f32 %v64, %v67
    %vm69 = vweird.f32 %v63
    %vm70 = vweird.f32 %v64
    %vm71 = vmor %vm69, %vm70
    %v72 = vsel %vm71, %v64, %v68
    %v73 = vand.u32 2147483647, %v63
    %vm74 = vcmp.eq.f32.partialorder %v73, 8.507059e+37
    %v75 = vand.u32 %v63, 2147483648
    %v76 = vor.u32 1.1754944e-38, %v75
    %v77 = vsel %vm74, %v76, %v72
    %v78 = vmul.f32 1.0, %v77
    %v79 = vtanh.pop %v59
    %v80 = vmul.f32 %v78, 0.0
    %82 = vrot.lane.b32.xlu0 %v79, 122
    %v83 = vpop.permute.xlu0 %82
    %v85 = vmul.f32 %v78, %v83
    %87 = vrot.lane.b32.xlu0 %v85, 2
    %v88 = vpop.permute.xlu0 %87
    %v90 = vadd.f32 %v80, %v88
    %v91 = vtanh.pop %v90
    %93 = vrot.lane.b32.xlu0 %v91, 2
    %v94 = vpop.permute.xlu0 %93
    %v96 = vmul.f32 %v78, %v94
    %97 = vset.pattern.permute.xlu0 1
    %98 = vperm.xlu0 %97, %v44
    %v99 = vpop.permute.xlu0 %98
    %v101 = vmul.f32 %v99, %v50
    %v102 = vadd.f32 %v101, %v52
    %104 = vset.pattern.permute.xlu0 4
    %105 = vperm.xlu0 %104, %v96
    %v106 = vpop.permute.xlu0 %105
    %v108 = vmul.f32 %v106, %v54
    %v109 = vadd.f32 %v102, %v108
    %110 = vset.pattern.permute.xlu0 5
    %111 = vperm.xlu0 %110, %v96
    %v112 = vpop.permute.xlu0 %111
    %v114 = vmul.f32 %v112, %v57
    %v115 = vadd.f32 %v109, %v114
    %v116 = vxor.u32 %v115, 2147483648
    %v117 = vmul.f32 %v116, 1.442695
    %v118 = vpow.pop %v117
    %v119 = vadd.f32 %v118, 1.0
    %v120 = vrcp.pop %v119
    %v121 = vmul.f32 %v119, %v120
    %v122 = vsub.f32 1.0, %v121
    %v123 = vmul.f32 %v120, %v122
    %v124 = vadd.f32 %v120, %v123
    %vm125 = vweird.f32 %v119
    %vm126 = vweird.f32 %v120
    %vm127 = vmor %vm125, %vm126
    %v128 = vsel %vm127, %v120, %v124
    %v129 = vand.u32 2147483647, %v119
    %vm130 = vcmp.eq.f32.partialorder %v129, 8.507059e+37
    %v131 = vand.u32 %v119, 2147483648
    %v132 = vor.u32 1.1754944e-38, %v131
    %v133 = vsel %vm130, %v132, %v128
    %v134 = vmul.f32 1.0, %v133
    %v135 = vtanh.pop %v115
    %v136 = vmul.f32 %v134, %v90
    %138 = vrot.lane.b32.xlu0 %v135, 122
    %v139 = vpop.permute.xlu0 %138
    %v141 = vmul.f32 %v134, %v139
    %143 = vrot.lane.b32.xlu0 %v141, 2
    %v144 = vpop.permute.xlu0 %143
    %v146 = vadd.f32 %v136, %v144
    %v147 = vtanh.pop %v146
    %149 = vrot.lane.b32.xlu0 %v147, 2
    %v150 = vpop.permute.xlu0 %149
    %v152 = vmul.f32 %v134, %v150
    %153 = vset.pattern.permute.xlu0 2
    %154 = vperm.xlu0 %153, %v44
    %v155 = vpop.permute.xlu0 %154
    %v157 = vmul.f32 %v155, %v50
    %v158 = vadd.f32 %v157, %v52
    %160 = vset.pattern.permute.xlu0 4
    %161 = vperm.xlu0 %160, %v152
    %v162 = vpop.permute.xlu0 %161
    %v164 = vmul.f32 %v162, %v54
    %v165 = vadd.f32 %v158, %v164
    %166 = vset.pattern.permute.xlu0 5
    %167 = vperm.xlu0 %166, %v152
    %v168 = vpop.permute.xlu0 %167
    %v170 = vmul.f32 %v168, %v57
    %v171 = vadd.f32 %v165, %v170
    %v172 = vxor.u32 %v171, 2147483648
    %v173 = vmul.f32 %v172, 1.442695
    %v174 = vpow.pop %v173
    %v175 = vadd.f32 %v174, 1.0
    %v176 = vrcp.pop %v175
    %v177 = vmul.f32 %v175, %v176
    %v178 = vsub.f32 1.0, %v177
    %v179 = vmul.f32 %v176, %v178
    %v180 = vadd.f32 %v176, %v179
    %vm181 = vweird.f32 %v175
    %vm182 = vweird.f32 %v176
    %vm183 = vmor %vm181, %vm182
    %v184 = vsel %vm183, %v176, %v180
    %v185 = vand.u32 2147483647, %v175
    %vm186 = vcmp.eq.f32.partialorder %v185, 8.507059e+37
    %v187 = vand.u32 %v175, 2147483648
    %v188 = vor.u32 1.1754944e-38, %v187
    %v189 = vsel %vm186, %v188, %v184
    %v190 = vmul.f32 1.0, %v189
    %v191 = vtanh.pop %v171
    %v192 = vmul.f32 %v190, %v146
    %194 = vrot.lane.b32.xlu0 %v191, 122
    %v195 = vpop.permute.xlu0 %194
    %v197 = vmul.f32 %v190, %v195
    %199 = vrot.lane.b32.xlu0 %v197, 2
    %v200 = vpop.permute.xlu0 %199
    %v202 = vadd.f32 %v192, %v200
    %v203 = vtanh.pop %v202
    %205 = vrot.lane.b32.xlu0 %v203, 2
    %v206 = vpop.permute.xlu0 %205
    %v208 = vmul.f32 %v190, %v206
    %209 = vset.pattern.permute.xlu0 3
    %210 = vperm.xlu0 %209, %v44
    %v211 = vpop.permute.xlu0 %210
    %v213 = vmul.f32 %v211, %v50
    %v214 = vadd.f32 %v213, %v52
    %216 = vset.pattern.permute.xlu0 4
    %217 = vperm.xlu0 %216, %v208
    %v218 = vpop.permute.xlu0 %217
    %v220 = vmul.f32 %v218, %v54
    %v221 = vadd.f32 %v214, %v220
    %222 = vset.pattern.permute.xlu0 5
    %223 = vperm.xlu0 %222, %v208
    %v224 = vpop.permute.xlu0 %223
    %v226 = vmul.f32 %v224, %v57
    %v227 = vadd.f32 %v221, %v226
    %v228 = vxor.u32 %v227, 2147483648
    %v229 = vmul.f32 %v228, 1.442695
    %v230 = vpow.pop %v229
    %v231 = vadd.f32 %v230, 1.0
    %v232 = vrcp.pop %v231
    %v233 = vmul.f32 %v231, %v232
    %v234 = vsub.f32 1.0, %v233
    %v235 = vmul.f32 %v232, %v234
    %v236 = vadd.f32 %v232, %v235
    %vm237 = vweird.f32 %v231
    %vm238 = vweird.f32 %v232
    %vm239 = vmor %vm237, %vm238
    %v240 = vsel %vm239, %v232, %v236
    %v241 = vand.u32 2147483647, %v231
    %vm242 = vcmp.eq.f32.partialorder %v241, 8.507059e+37
    %v243 = vand.u32 %v231, 2147483648
    %v244 = vor.u32 1.1754944e-38, %v243
    %v245 = vsel %vm242, %v244, %v240
    %v246 = vmul.f32 1.0, %v245
    %v247 = vtanh.pop %v227
    %v248 = vmul.f32 %v246, %v202
    %250 = vrot.lane.b32.xlu0 %v247, 122
    %v251 = vpop.permute.xlu0 %250
    %v253 = vmul.f32 %v246, %v251
    %255 = vrot.lane.b32.xlu0 %v253, 2
    %v256 = vpop.permute.xlu0 %255
    %v258 = vadd.f32 %v248, %v256
    %v259 = vtanh.pop %v258
    %261 = vrot.lane.b32.xlu0 %v259, 2
    %v262 = vpop.permute.xlu0 %261
    %v264 = vmul.f32 %v246, %v262
    %265 = vset.pattern.permute.xlu0 4
    %266 = vperm.xlu0 %265, %v44
    %v267 = vpop.permute.xlu0 %266
    %v269 = vmul.f32 %v267, %v50
    %v270 = vadd.f32 %v269, %v52
    %272 = vset.pattern.permute.xlu0 4
    %273 = vperm.xlu0 %272, %v264
    %v274 = vpop.permute.xlu0 %273
    %v276 = vmul.f32 %v274, %v54
    %v277 = vadd.f32 %v270, %v276
    %278 = vset.pattern.permute.xlu0 5
    %279 = vperm.xlu0 %278, %v264
    %v280 = vpop.permute.xlu0 %279
    %v282 = vmul.f32 %v280, %v57
    %v283 = vadd.f32 %v277, %v282
    %v284 = vxor.u32 %v283, 2147483648
    %v285 = vmul.f32 %v284, 1.442695
    %v286 = vpow.pop %v285
    %v287 = vadd.f32 %v286, 1.0
    %v288 = vrcp.pop %v287
    %v289 = vmul.f32 %v287, %v288
    %v290 = vsub.f32 1.0, %v289
    %v291 = vmul.f32 %v288, %v290
    %v292 = vadd.f32 %v288, %v291
    %vm293 = vweird.f32 %v287
    %vm294 = vweird.f32 %v288
    %vm295 = vmor %vm293, %vm294
    %v296 = vsel %vm295, %v288, %v292
    %v297 = vand.u32 2147483647, %v287
    %vm298 = vcmp.eq.f32.partialorder %v297, 8.507059e+37
    %v299 = vand.u32 %v287, 2147483648
    %v300 = vor.u32 1.1754944e-38, %v299
    %v301 = vsel %vm298, %v300, %v296
    %v302 = vmul.f32 1.0, %v301
    %v303 = vtanh.pop %v283
    %v304 = vmul.f32 %v302, %v258
    %306 = vrot.lane.b32.xlu0 %v303, 122
    %v307 = vpop.permute.xlu0 %306
    %v309 = vmul.f32 %v302, %v307
    %311 = vrot.lane.b32.xlu0 %v309, 2
    %v312 = vpop.permute.xlu0 %311
    %v314 = vadd.f32 %v304, %v312
    %v315 = vtanh.pop %v314
    %317 = vrot.lane.b32.xlu0 %v315, 2
    %v318 = vpop.permute.xlu0 %317
    %v320 = vmul.f32 %v302, %v318
    %321 = vset.pattern.permute.xlu0 5
    %322 = vperm.xlu0 %321, %v44
    %v323 = vpop.permute.xlu0 %322
    %v325 = vmul.f32 %v323, %v50
    %v326 = vadd.f32 %v325, %v52
    %328 = vset.pattern.permute.xlu0 4
    %329 = vperm.xlu0 %328, %v320
    %v330 = vpop.permute.xlu0 %329
    %v332 = vmul.f32 %v330, %v54
    %v333 = vadd.f32 %v326, %v332
    %334 = vset.pattern.permute.xlu0 5
    %335 = vperm.xlu0 %334, %v320
    %v336 = vpop.permute.xlu0 %335
    %v338 = vmul.f32 %v336, %v57
    %v339 = vadd.f32 %v333, %v338
    %v340 = vxor.u32 %v339, 2147483648
    %v341 = vmul.f32 %v340, 1.442695
    %v342 = vpow.pop %v341
    %v343 = vadd.f32 %v342, 1.0
    %v344 = vrcp.pop %v343
    %v345 = vmul.f32 %v343, %v344
    %v346 = vsub.f32 1.0, %v345
    %v347 = vmul.f32 %v344, %v346
    %v348 = vadd.f32 %v344, %v347
    %vm349 = vweird.f32 %v343
    %vm350 = vweird.f32 %v344
    %vm351 = vmor %vm349, %vm350
    %v352 = vsel %vm351, %v344, %v348
    %v353 = vand.u32 2147483647, %v343
    %vm354 = vcmp.eq.f32.partialorder %v353, 8.507059e+37
    %v355 = vand.u32 %v343, 2147483648
    %v356 = vor.u32 1.1754944e-38, %v355
    %v357 = vsel %vm354, %v356, %v352
    %v358 = vmul.f32 1.0, %v357
    %v359 = vtanh.pop %v339
    %v360 = vmul.f32 %v358, %v314
    %362 = vrot.lane.b32.xlu0 %v359, 122
    %v363 = vpop.permute.xlu0 %362
    %v365 = vmul.f32 %v358, %v363
    %367 = vrot.lane.b32.xlu0 %v365, 2
    %v368 = vpop.permute.xlu0 %367
    %v370 = vadd.f32 %v360, %v368
    %v371 = vtanh.pop %v370
    %373 = vrot.lane.b32.xlu0 %v371, 2
    %v374 = vpop.permute.xlu0 %373
    %v376 = vmul.f32 %v358, %v374
    %377 = vset.pattern.permute.xlu0 6
    %378 = vperm.xlu0 %377, %v44
    %v379 = vpop.permute.xlu0 %378
    %v381 = vmul.f32 %v379, %v50
    %v382 = vadd.f32 %v381, %v52
    %384 = vset.pattern.permute.xlu0 4
    %385 = vperm.xlu0 %384, %v376
    %v386 = vpop.permute.xlu0 %385
    %v388 = vmul.f32 %v386, %v54
    %v389 = vadd.f32 %v382, %v388
    %390 = vset.pattern.permute.xlu0 5
    %391 = vperm.xlu0 %390, %v376
    %v392 = vpop.permute.xlu0 %391
    %v394 = vmul.f32 %v392, %v57
    %v395 = vadd.f32 %v389, %v394
    %v396 = vxor.u32 %v395, 2147483648
    %v397 = vmul.f32 %v396, 1.442695
    %v398 = vpow.pop %v397
    %v399 = vadd.f32 %v398, 1.0
    %v400 = vrcp.pop %v399
    %v401 = vmul.f32 %v399, %v400
    %v402 = vsub.f32 1.0, %v401
    %v403 = vmul.f32 %v400, %v402
    %v404 = vadd.f32 %v400, %v403
    %vm405 = vweird.f32 %v399
    %vm406 = vweird.f32 %v400
    %vm407 = vmor %vm405, %vm406
    %v408 = vsel %vm407, %v400, %v404
    %v409 = vand.u32 2147483647, %v399
    %vm410 = vcmp.eq.f32.partialorder %v409, 8.507059e+37
    %v411 = vand.u32 %v399, 2147483648
    %v412 = vor.u32 1.1754944e-38, %v411
    %v413 = vsel %vm410, %v412, %v408
    %v414 = vmul.f32 1.0, %v413
    %v415 = vtanh.pop %v395
    %v416 = vmul.f32 %v414, %v370
    %418 = vrot.lane.b32.xlu0 %v415, 122
    %v419 = vpop.permute.xlu0 %418
    %v421 = vmul.f32 %v414, %v419
    %423 = vrot.lane.b32.xlu0 %v421, 2
    %v424 = vpop.permute.xlu0 %423
    %v426 = vadd.f32 %v416, %v424
    %v427 = vtanh.pop %v426
    %429 = vrot.lane.b32.xlu0 %v427, 2
    %v430 = vpop.permute.xlu0 %429
    %v432 = vmul.f32 %v414, %v430
    %433 = vset.pattern.permute.xlu0 7
    %434 = vperm.xlu0 %433, %v44
    %v435 = vpop.permute.xlu0 %434
    %v437 = vmul.f32 %v435, %v50
    %v438 = vadd.f32 %v437, %v52
    %440 = vset.pattern.permute.xlu0 4
    %441 = vperm.xlu0 %440, %v432
    %v442 = vpop.permute.xlu0 %441
    %v444 = vmul.f32 %v442, %v54
    %v445 = vadd.f32 %v438, %v444
    %446 = vset.pattern.permute.xlu0 5
    %447 = vperm.xlu0 %446, %v432
    %v448 = vpop.permute.xlu0 %447
    %v450 = vmul.f32 %v448, %v57
    %v451 = vadd.f32 %v445, %v450
    %v452 = vxor.u32 %v451, 2147483648
    %v453 = vmul.f32 %v452, 1.442695
    %v454 = vpow.pop %v453
    %v455 = vadd.f32 %v454, 1.0
    %v456 = vrcp.pop %v455
    %v457 = vmul.f32 %v455, %v456
    %v458 = vsub.f32 1.0, %v457
    %v459 = vmul.f32 %v456, %v458
    %v460 = vadd.f32 %v456, %v459
    %vm461 = vweird.f32 %v455
    %vm462 = vweird.f32 %v456
    %vm463 = vmor %vm461, %vm462
    %v464 = vsel %vm463, %v456, %v460
    %v465 = vand.u32 2147483647, %v455
    %vm466 = vcmp.eq.f32.partialorder %v465, 8.507059e+37
    %v467 = vand.u32 %v455, 2147483648
    %v468 = vor.u32 1.1754944e-38, %v467
    %v469 = vsel %vm466, %v468, %v464
    %v470 = vmul.f32 1.0, %v469
    %v471 = vtanh.pop %v451
    %v472 = vmul.f32 %v470, %v426
    %474 = vrot.lane.b32.xlu0 %v471, 122
    %v475 = vpop.permute.xlu0 %474
    %v477 = vmul.f32 %v470, %v475
    %479 = vrot.lane.b32.xlu0 %v477, 2
    %v480 = vpop.permute.xlu0 %479
    %v482 = vadd.f32 %v472, %v480
    %v483 = vtanh.pop %v482
    %485 = vrot.lane.b32.xlu0 %v483, 2
    %v486 = vpop.permute.xlu0 %485
    %v488 = vmul.f32 %v470, %v486
    %v489 = vperm.slane %v42, 0
    %491 = vrot.lane.b32.xlu0 %v489, 4
    %v492 = vpop.permute.xlu0 %491
    %v494 = vmul.f32 %v488, %v492
    %496 = vrot.lane.b32.xlu0 %v494, 124
    %v497 = vpop.permute.xlu0 %496
    %vm499 = vcmask 11264
    %v500 = vsel %vm499, %v497, 0.0
    %501 = vadd.xlane.f32.xlu0 %v500
    %v502 = vpop.xlane.xlu0 %501
    %v503 = vperm.slane %v43, 0
    %v504 = vadd.f32 %v502, %v503
    %vm505 = vcmask 3072
    %506 = vst.msk [vmem:[%s2] sm:$0xf] %vm505, %v504
    // Predicated region
    $region18: #{lstm_forward.1} parent=1 // pred_check
      _
    $region19: #{lstm_forward.1} parent=1 // pred_check_branch
      %508 = sbr.rel (0) target = $region21
    $region20: #{lstm_forward.1} parent=1 // pred_region
      _
    $region21: #{lstm_forward.1} parent=1 // pred_fallthru
      _
    // Predicated region
    $region22: #{lstm_forward.1} parent=1 // pred_check
      _
    $region23: #{lstm_forward.1} parent=1 // pred_check_branch
      %510 = sbr.rel (0) target = $region25
    $region24: #{lstm_forward.1} parent=1 // pred_region
      _
    $region25: #{lstm_forward.1} parent=1 // pred_fallthru
      _
    %511 = vsyncpa [#allocation3], 1
    %512 = vsyncpa [#allocation5], 1

</llo_original>
